<compile_context>
chip_gen: v6e
topology: v6e:2x2x1
jax: 0.10.0
libtpu: 0.0.40
codegen_flags: <defaults>
</compile_context>

<pallas_src>
import functools

import jax
import jax.numpy as jnp
from jax import lax
from jax.experimental import pallas as pl
from jax.experimental.pallas import tpu as pltpu

_LANE = 128
_SUBLANE = 8


def _round_up(x, m):
  return (x + m - 1) // m * m


def _cdiv(a, b):
  return -(-a // b)


def _tpu_vmem_capacity_bytes():
  try:
    return int(pltpu.get_tpu_info().vmem_capacity_bytes)
  except Exception:
    return 64 * 1024 * 1024  # conservative fallback (v7x per-TC size)


def _is_multi_tensorcore():
  # v7x has 2 TensorCores per chip (and 64 MiB VMEM per TC); v5e/v6e have 1.
  try:
    if "v7" in jax.devices()[0].device_kind.lower():
      return True
  except Exception:
    pass
  return _tpu_vmem_capacity_bytes() <= 64 * 1024 * 1024


# ----------------------------- Pallas kernel ------------------------------- #
def ffn_kernel(x_ref, w1_ref, b1_ref, w2_ref, b2_ref, g_ref, be_ref, o_ref,
               *, eps, inv_d, hid_chunk, num_hid_chunks):
  # x_ref: (Rt, d_in_pad) f32 row tile.  Weights are full arrays in VMEM.
  x = x_ref[...]                                   # f32 residual copy
  xb = x.astype(jnp.bfloat16)                      # bf16 MXU operand

  def hid_slab(w1c, b1c, w2c):
    # relu(x @ W1_chunk + b1_chunk) @ W2_chunk  with f32 accumulation
    h = jnp.dot(xb, w1c, preferred_element_type=jnp.float32)
    h = jnp.maximum(h + b1c, 0.0)
    return jnp.dot(h.astype(jnp.bfloat16), w2c,
                   preferred_element_type=jnp.float32)

  if num_hid_chunks == 1:
    y = hid_slab(w1_ref[...], b1_ref[...], w2_ref[...])
  else:
    # Chunk the hidden dim so the live (Rt, hid_chunk) activation stays small.
    def body(c, acc):
      start = pl.multiple_of(c * hid_chunk, hid_chunk)
      return acc + hid_slab(w1_ref[:, pl.ds(start, hid_chunk)],
                            b1_ref[:, pl.ds(start, hid_chunk)],
                            w2_ref[pl.ds(start, hid_chunk), :])
    y = lax.fori_loop(0, num_hid_chunks, body,
                      jnp.zeros((x.shape[0], x.shape[1]), jnp.float32))

  # Bias + dropout(eval, identity) + residual.  Padded feature lanes stay 0.
  y = y + b2_ref[...] + x

  # Single-pass LayerNorm over the *real* d_in lanes (padded lanes are zero,
  # so the sums are exact; inv_d = 1/d_in, not 1/d_in_pad).
  s1 = jnp.sum(y, axis=-1, keepdims=True)
  s2 = jnp.sum(y * y, axis=-1, keepdims=True)
  mu = s1 * inv_d
  var = s2 * inv_d - mu * mu
  out = (y - mu) * lax.rsqrt(var + eps) * g_ref[...] + be_ref[...]
  o_ref[...] = out.astype(o_ref.dtype)


# ----------------------------- Pallas wrapper ------------------------------ #
def positionwise_ff_pallas(x, w1, b1, w2, b2, gamma, beta, *, eps=1e-5,
                           block_rows=None):
  """x: (B, L, d_in) f32.  w1: (d_in, d_hid) bf16, w2: (d_hid, d_in) bf16.
     b1: (1, d_hid), b2/gamma/beta: (1, d_in), all f32."""
  B, L, d_in = x.shape
  d_hid = w1.shape[1]
  rows = B * L

  multi_tc = _is_multi_tensorcore()
  vmem_cap = _tpu_vmem_capacity_bytes()
  # Leave headroom for compiler-internal scratch (never request all of VMEM).
  vmem_limit = min(vmem_cap * 3 // 4, 96 * 1024 * 1024)

  # ---- lane-dense feature padding (zeros => exact math, sliced off after) ---
  d_in_pad = max(_round_up(d_in, _LANE), _LANE)
  max_hid_chunk = 512 if multi_tc else 1024
  d_hid_pad = max(_round_up(d_hid, _LANE), _LANE)
  if d_hid_pad > max_hid_chunk:
    hid_chunk = max_hid_chunk
    d_hid_pad = _round_up(d_hid_pad, hid_chunk)
  else:
    hid_chunk = d_hid_pad
  num_hid_chunks = d_hid_pad // hid_chunk

  # In a real model these pads would be applied once at parameter load time.
  w1p = jnp.pad(w1, ((0, d_in_pad - d_in), (0, d_hid_pad - d_hid)))
  b1p = jnp.pad(b1, ((0, 0), (0, d_hid_pad - d_hid)))
  w2p = jnp.pad(w2, ((0, d_hid_pad - d_hid), (0, d_in_pad - d_in)))
  b2p = jnp.pad(b2, ((0, 0), (0, d_in_pad - d_in)))
  gp = jnp.pad(gamma, ((0, 0), (0, d_in_pad - d_in)))
  bp = jnp.pad(beta, ((0, 0), (0, d_in_pad - d_in)))

  weight_bytes = ((w1p.size + w2p.size) * 2            # bf16 weights
                  + (b1p.size + b2p.size + gp.size + bp.size) * 4)

  # ---- generation-aware row-tile choice ----
  if block_rows is None:
    rows8 = _round_up(rows, _SUBLANE)
    if multi_tc:
      # v7x: 2 TensorCores, 64 MiB VMEM -> smaller tiles, even step count.
      cap = 256
      steps = max(2, _cdiv(rows8, cap))
      if steps % 2:
        steps += 1
      block_rows = _round_up(_cdiv(rows8, steps), _SUBLANE)
    else:
      # v5e/v6e: grid is a serial loop -> one big lane-dense tile.
      block_rows = min(rows8, 1024)

  # Shrink the tile until resident weights + live tile fit the VMEM budget.
  def _tile_bytes(br):
    io = br * d_in_pad * 4 * 2 * 2            # x + out tiles, double-buffered f32
    h = br * hid_chunk * (4 + 2)              # h f32 + bf16 MXU copy
    mid = br * d_in_pad * 4 * 2               # y accumulator + LN temporaries
    return io + h + mid

  while block_rows > _SUBLANE and weight_bytes + _tile_bytes(block_rows) > vmem_limit:
    block_rows = _round_up(block_rows // 2, _SUBLANE)

  # ---- pad rows & launch ----
  xf = x.reshape(rows, d_in)
  padded_rows = _round_up(rows, block_rows)
  xf = jnp.pad(xf, ((0, padded_rows - rows), (0, d_in_pad - d_in)))
  grid = (padded_rows // block_rows,)

  # Grid-invariant params: whole-array resident in VMEM (no double buffering).
  vmem_full = pl.BlockSpec(memory_space=pltpu.MemorySpace.VMEM)
  in_specs = [
      pl.BlockSpec((block_rows, d_in_pad), lambda i: (i, 0)),  # x row tile
      vmem_full,  # w1 (bf16)
      vmem_full,  # b1
      vmem_full,  # w2 (bf16)
      vmem_full,  # b2
      vmem_full,  # gamma
      vmem_full,  # beta
  ]
  out_specs = pl.BlockSpec((block_rows, d_in_pad), lambda i: (i, 0))
  out_shape = jax.ShapeDtypeStruct((padded_rows, d_in_pad), jnp.float32)

  kernel = functools.partial(
      ffn_kernel, eps=eps, inv_d=1.0 / d_in,
      hid_chunk=hid_chunk, num_hid_chunks=num_hid_chunks)

  out = pl.pallas_call(
      kernel,
      grid=grid,
      in_specs=in_specs,
      out_specs=out_specs,
      out_shape=out_shape,
      compiler_params=pltpu.CompilerParams(
          dimension_semantics=("parallel",),
          vmem_limit_bytes=int(vmem_limit)),
  )(xf, w1p, b1p, w2p, b2p, gp, bp)

  return out[:rows, :d_in].reshape(B, L, d_in)


# ------------------------------ Pure-JAX reference ------------------------- #
def positionwise_ff_ref(x, w1, b1, w2, b2, gamma, beta, eps=1e-5):
  # Mirrors the kernel's numerics: bf16 MXU operands, f32 accumulation,
  # f32 elementwise math.
  w1f = w1.astype(jnp.float32)
  w2f = w2.astype(jnp.float32)
  xb = x.astype(jnp.bfloat16).astype(jnp.float32)
  h = jnp.maximum(xb @ w1f + b1, 0.0)
  hb = h.astype(jnp.bfloat16).astype(jnp.float32)
  y = hb @ w2f + b2 + x
  mu = y.mean(-1, keepdims=True)
  var = ((y - mu) ** 2).mean(-1, keepdims=True)
  return (y - mu) / jnp.sqrt(var + eps) * gamma + beta


# ----------------------------------- main ---------------------------------- #
if __name__ == "__main__":
  B, L, d_in, d_hid = 2, 8, 32, 64

  key = jax.random.PRNGKey(0)
  kx, k1, kb1, k2, kb2, kg, kb = jax.random.split(key, 7)

  x = jax.random.normal(kx, (B, L, d_in), jnp.float32)
  # Conv1d(d_in, d_hid, 1) weight, pre-transposed to (d_in, d_hid), bf16 in HBM.
  w1 = (jax.random.normal(k1, (d_in, d_hid), jnp.float32)
        * (1.0 / d_in) ** 0.5).astype(jnp.bfloat16)
  b1 = jax.random.normal(kb1, (1, d_hid), jnp.float32) * 0.02
  # Conv1d(d_hid, d_in, 1) weight, pre-transposed to (d_hid, d_in), bf16 in HBM.
  w2 = (jax.random.normal(k2, (d_hid, d_in), jnp.float32)
        * (1.0 / d_hid) ** 0.5).astype(jnp.bfloat16)
  b2 = jax.random.normal(kb2, (1, d_in), jnp.float32) * 0.02
  gamma = 1.0 + 0.1 * jax.random.normal(kg, (1, d_in), jnp.float32)
  beta = 0.1 * jax.random.normal(kb, (1, d_in), jnp.float32)

  out = positionwise_ff_pallas(x, w1, b1, w2, b2, gamma, beta)
  out = jax.block_until_ready(out)

  ref = positionwise_ff_ref(x, w1, b1, w2, b2, gamma, beta)
  if not jnp.allclose(out, ref, atol=2e-3, rtol=2e-3):
    max_err = float(jnp.max(jnp.abs(out - ref)))
    raise SystemExit(f"mismatch vs reference (max abs err {max_err})")

  print("KERNEL_OK")
</pallas_src>

<mosaic_0001>
module attributes {stable_mosaic.version = 11 : i64} {
  func.func @ffn_kernel(%arg0: i32, %arg1: memref<8x128xf32, #tpu.memory_space<vmem>>, %arg2: memref<128x128xbf16, #tpu.memory_space<vmem>>, %arg3: memref<1x128xf32, #tpu.memory_space<vmem>>, %arg4: memref<128x128xbf16, #tpu.memory_space<vmem>>, %arg5: memref<1x128xf32, #tpu.memory_space<vmem>>, %arg6: memref<1x128xf32, #tpu.memory_space<vmem>>, %arg7: memref<1x128xf32, #tpu.memory_space<vmem>>, %arg8: memref<8x128xf32, #tpu.memory_space<vmem>>) attributes {dimension_semantics = [#tpu.dimension_semantics<parallel>], iteration_bounds = array<i64: 2>, scalar_prefetch = 0 : i64, scratch_operands = 0 : i64, tpu.core_type = #tpu.core_type<tc>, window_params = [{transform_indices = @transform_0, window_bounds = array<i64: 8, 128>}, {pipeline_mode = #tpu.pipeline_mode<synchronous>, transform_indices = @transform_1, window_bounds = array<i64: 128, 128>}, {pipeline_mode = #tpu.pipeline_mode<synchronous>, transform_indices = @transform_2, window_bounds = array<i64: 1, 128>}, {pipeline_mode = #tpu.pipeline_mode<synchronous>, transform_indices = @transform_3, window_bounds = array<i64: 128, 128>}, {pipeline_mode = #tpu.pipeline_mode<synchronous>, transform_indices = @transform_4, window_bounds = array<i64: 1, 128>}, {pipeline_mode = #tpu.pipeline_mode<synchronous>, transform_indices = @transform_5, window_bounds = array<i64: 1, 128>}, {pipeline_mode = #tpu.pipeline_mode<synchronous>, transform_indices = @transform_6, window_bounds = array<i64: 1, 128>}, {transform_indices = @transform_7, window_bounds = array<i64: 8, 128>}]} {
    %c0 = arith.constant 0 : index
    %c0_0 = arith.constant 0 : index
    %0 = vector.load %arg1[%c0, %c0_0] : memref<8x128xf32, #tpu.memory_space<vmem>>, vector<8x128xf32>
    %1 = arith.truncf %0 : vector<8x128xf32> to vector<8x128xbf16>
    %c0_1 = arith.constant 0 : index
    %c0_2 = arith.constant 0 : index
    %2 = vector.load %arg2[%c0_1, %c0_2] : memref<128x128xbf16, #tpu.memory_space<vmem>>, vector<128x128xbf16>
    %c0_3 = arith.constant 0 : index
    %c0_4 = arith.constant 0 : index
    %3 = vector.load %arg3[%c0_3, %c0_4] : memref<1x128xf32, #tpu.memory_space<vmem>>, vector<1x128xf32>
    %c0_5 = arith.constant 0 : index
    %c0_6 = arith.constant 0 : index
    %4 = vector.load %arg4[%c0_5, %c0_6] : memref<128x128xbf16, #tpu.memory_space<vmem>>, vector<128x128xbf16>
    %cst = arith.constant dense<0.000000e+00> : vector<8x128xf32>
    %5 = tpu.matmul %1, %2, %cst {dimension_numbers = #tpu.dot_dimension_numbers<[1], [0], [0], [1], [0, 0, 1, 1], [], []>} : vector<8x128xbf16>, vector<128x128xbf16>, vector<8x128xf32> -> vector<8x128xf32>
    %6 = vector.broadcast %3 : vector<1x128xf32> to vector<8x128xf32>
    %7 = arith.addf %5, %6 : vector<8x128xf32>
    %cst_7 = arith.constant 0.000000e+00 : f32
    %8 = vector.broadcast %cst_7 : f32 to vector<8x128xf32>
    %9 = arith.maximumf %7, %8 : vector<8x128xf32>
    %10 = arith.truncf %9 : vector<8x128xf32> to vector<8x128xbf16>
    %cst_8 = arith.constant dense<0.000000e+00> : vector<8x128xf32>
    %11 = tpu.matmul %10, %4, %cst_8 {dimension_numbers = #tpu.dot_dimension_numbers<[1], [0], [0], [1], [0, 0, 1, 1], [], []>} : vector<8x128xbf16>, vector<128x128xbf16>, vector<8x128xf32> -> vector<8x128xf32>
    %c0_9 = arith.constant 0 : index
    %c0_10 = arith.constant 0 : index
    %12 = vector.load %arg5[%c0_9, %c0_10] : memref<1x128xf32, #tpu.memory_space<vmem>>, vector<1x128xf32>
    %13 = vector.broadcast %12 : vector<1x128xf32> to vector<8x128xf32>
    %14 = arith.addf %11, %13 : vector<8x128xf32>
    %15 = arith.addf %14, %0 : vector<8x128xf32>
    %cst_11 = arith.constant dense<0.000000e+00> : vector<8xf32>
    %16 = vector.multi_reduction <add>, %15, %cst_11 [1] : vector<8x128xf32> to vector<8xf32>
    %17 = vector.shape_cast %16 : vector<8xf32> to vector<8x1xf32>
    %18 = arith.mulf %15, %15 : vector<8x128xf32>
    %cst_12 = arith.constant dense<0.000000e+00> : vector<8xf32>
    %19 = vector.multi_reduction <add>, %18, %cst_12 [1] : vector<8x128xf32> to vector<8xf32>
    %20 = vector.shape_cast %19 : vector<8xf32> to vector<8x1xf32>
    %cst_13 = arith.constant 3.125000e-02 : f32
    %21 = vector.broadcast %cst_13 : f32 to vector<8x1xf32>
    %22 = arith.mulf %17, %21 : vector<8x1xf32>
    %cst_14 = arith.constant 3.125000e-02 : f32
    %23 = vector.broadcast %cst_14 : f32 to vector<8x1xf32>
    %24 = arith.mulf %20, %23 : vector<8x1xf32>
    %25 = arith.mulf %22, %22 : vector<8x1xf32>
    %26 = arith.subf %24, %25 : vector<8x1xf32>
    %27 = vector.broadcast %22 : vector<8x1xf32> to vector<8x128xf32>
    %28 = arith.subf %15, %27 : vector<8x128xf32>
    %cst_15 = arith.constant 9.99999974E-6 : f32
    %29 = vector.broadcast %cst_15 : f32 to vector<8x1xf32>
    %30 = arith.addf %26, %29 : vector<8x1xf32>
    %31 = math.rsqrt %30 : vector<8x1xf32>
    %32 = vector.broadcast %31 : vector<8x1xf32> to vector<8x128xf32>
    %33 = arith.mulf %28, %32 : vector<8x128xf32>
    %c0_16 = arith.constant 0 : index
    %c0_17 = arith.constant 0 : index
    %34 = vector.load %arg6[%c0_16, %c0_17] : memref<1x128xf32, #tpu.memory_space<vmem>>, vector<1x128xf32>
    %35 = vector.broadcast %34 : vector<1x128xf32> to vector<8x128xf32>
    %36 = arith.mulf %33, %35 : vector<8x128xf32>
    %c0_18 = arith.constant 0 : index
    %c0_19 = arith.constant 0 : index
    %37 = vector.load %arg7[%c0_18, %c0_19] : memref<1x128xf32, #tpu.memory_space<vmem>>, vector<1x128xf32>
    %38 = vector.broadcast %37 : vector<1x128xf32> to vector<8x128xf32>
    %39 = arith.addf %36, %38 : vector<8x128xf32>
    %c0_20 = arith.constant 0 : index
    %c0_21 = arith.constant 0 : index
    %40 = vector.load %arg8[%c0_20, %c0_21] : memref<8x128xf32, #tpu.memory_space<vmem>>, vector<8x128xf32>
    tpu.vector_store %arg8[%c0_20, %c0_21], %39 {strides = array<i32>} : memref<8x128xf32, #tpu.memory_space<vmem>>, vector<8x128xf32>,
    return
  }
  func.func @transform_0(%arg0: i32) -> (i32, i32) {
    %c0_i32 = arith.constant 0 : i32
    %c0_i32_0 = arith.constant 0 : i32
    return %arg0, %c0_i32 : i32, i32
  }
  func.func @transform_1(%arg0: i32) -> (i32, i32) {
    %c0_i32 = arith.constant 0 : i32
    %c0_i32_0 = arith.constant 0 : i32
    %c0_i32_1 = arith.constant 0 : i32
    return %c0_i32, %c0_i32_0 : i32, i32
  }
  func.func @transform_2(%arg0: i32) -> (i32, i32) {
    %c0_i32 = arith.constant 0 : i32
    %c0_i32_0 = arith.constant 0 : i32
    %c0_i32_1 = arith.constant 0 : i32
    return %c0_i32, %c0_i32_0 : i32, i32
  }
  func.func @transform_3(%arg0: i32) -> (i32, i32) {
    %c0_i32 = arith.constant 0 : i32
    %c0_i32_0 = arith.constant 0 : i32
    %c0_i32_1 = arith.constant 0 : i32
    return %c0_i32, %c0_i32_0 : i32, i32
  }
  func.func @transform_4(%arg0: i32) -> (i32, i32) {
    %c0_i32 = arith.constant 0 : i32
    %c0_i32_0 = arith.constant 0 : i32
    %c0_i32_1 = arith.constant 0 : i32
    return %c0_i32, %c0_i32_0 : i32, i32
  }
  func.func @transform_5(%arg0: i32) -> (i32, i32) {
    %c0_i32 = arith.constant 0 : i32
    %c0_i32_0 = arith.constant 0 : i32
    %c0_i32_1 = arith.constant 0 : i32
    return %c0_i32, %c0_i32_0 : i32, i32
  }
  func.func @transform_6(%arg0: i32) -> (i32, i32) {
    %c0_i32 = arith.constant 0 : i32
    %c0_i32_0 = arith.constant 0 : i32
    %c0_i32_1 = arith.constant 0 : i32
    return %c0_i32, %c0_i32_0 : i32, i32
  }
  func.func @transform_7(%arg0: i32) -> (i32, i32) {
    %c0_i32 = arith.constant 0 : i32
    %c0_i32_0 = arith.constant 0 : i32
    return %arg0, %c0_i32 : i32, i32
  }
}

</mosaic_0001>

<llo_original>
// kernel: tpu_custom_call.1
$region0: #{tpu_custom_call.1}
  #allocation0 [shape = 'u32[]', space=smem, size = 0x4, offset = 0x4, fixed_abs, tag = 'smem constant byte address 0x4 - core index']
  #allocation1 [shape = 'u32[144,128]{1,0:T(1,128)}', space=vmem, size = 0x12000, scoped, tag = 'internal scratch']
  %s0 = inlined_call_operand.hbm [shape: f32[16,128], index: 0, kind: input, shape index: {}]
  %s1 = inlined_call_operand.hbm [shape: bf16[128,128], index: 1, kind: input, shape index: {}]
  %s2 = inlined_call_operand.vmem [shape: f32[1,128], index: 2, kind: input, shape index: {}]
  %s3 = inlined_call_operand.hbm [shape: bf16[128,128], index: 3, kind: input, shape index: {}]
  %s4 = inlined_call_operand.vmem [shape: f32[1,128], index: 4, kind: input, shape index: {}]
  %s5 = inlined_call_operand.vmem [shape: f32[1,128], index: 5, kind: input, shape index: {}]
  %s6 = inlined_call_operand.vmem [shape: f32[1,128], index: 6, kind: input, shape index: {}]
  %s7 = inlined_call_operand.hbm [shape: f32[16,128], index: 7, kind: output, shape index: {}]
  %s8 = sld [smem:[#allocation0]]
  $region73: #{tpu_custom_call.1} parent=0
    _
  %s10 = ssub.s32 1, %s8
  %s11 = scalar_select 0, %s10, %s8
  $region1: #{tpu_custom_call.1} parent=0
    #allocation2 [shape = 'u8[8192]{0}', space=vmem, size = 0x2000, scoped, tag = 'input window, operand 0']
    #allocation3 [shape = 's32[2]{0}', space=sflag, size = 0x8, scoped, tag = 'scoped memory for tpu_custom_call.1']
    #allocation4 [shape = 's32[2]{0}', space=sflag, size = 0x8, scoped, tag = 'scoped memory for tpu_custom_call.1']
    #allocation5 [shape = 'u8[32768]{0}', space=vmem, size = 0x8000, scoped, tag = 'input window, operand 1, single buffered']
    #allocation6 [shape = 's32[1]{0}', space=sflag, size = 0x4, scoped, tag = 'scoped memory for tpu_custom_call.1']
    #allocation7 [shape = 'u8[32768]{0}', space=vmem, size = 0x8000, scoped, tag = 'input window, operand 3, single buffered']
    #allocation8 [shape = 'u8[8192]{0}', space=vmem, size = 0x2000, scoped, tag = 'output window, operand 0']
    %12 = vsyncpa [#allocation3], 0
    %s13 = scalar_lea.sflag [#allocation3], 1
    %14 = vsyncpa %s13, 0
    %15 = vsyncpa [#allocation6], 0
    %16 = vsyncpa [#allocation4], 0
    %s17 = scalar_lea.sflag [#allocation4], 1
    %18 = vsyncpa %s17, 0
    loop: start=0, step=1, limit=4
    $region2: #{tpu_custom_call.1} parent=1 // loop_pre_header
      _
    $region3: #{tpu_custom_call.1} parent=1 // loop_header
      %s20 = sphi 0, %s24
      %p21 = scmp.ge.s32.totalorder %s20, 4
      %s30 = sphi 0, %s32
      %s33 = sphi 0, %s30
      %s34 = sphi 0, %s33
      %s50 = sphi 0, %s34
      %s54 = sphi 0, %s54
      %s56 = sphi 0, %s54
      %s57 = sphi 0, %s56
      %s71 = sphi 0, %s57
      %s75 = sphi 0, %s75
      %s77 = sphi 0, %s75
      %s78 = sphi 0, %s77
      %s92 = sphi 0, %s78
      %s96 = sphi 0, %s96
      %s98 = sphi 0, %s96
      %s99 = sphi 0, %s98
      %s113 = sphi 0, %s99
      %s117 = sphi 0, %s117
      %s119 = sphi 0, %s117
      %s120 = sphi 0, %s119
      %s134 = sphi 0, %s120
      %s138 = sphi 0, %s138
      %s140 = sphi 0, %s138
      %s141 = sphi 0, %s140
      %s155 = sphi 0, %s141
      %s159 = sphi 0, %s159
      %s161 = sphi 0, %s159
      %s162 = sphi 0, %s161
      %s176 = sphi 0, %s162
      %s182 = sphi 0, %s184
      %s185 = sphi 0, %s182
      %s186 = sphi 0, %s185
      %s202 = sphi 0, %s186
    $region4: #{tpu_custom_call.1} parent=1 // loop_header_branch
      %23 = sbr.rel (%p21) target = $region8
    $region5: #{tpu_custom_call.1} parent=1 // loop_body
      %s25 = ssub.s32 %s20, 1
      %s26 = ssub.s32 %s20, 2
      %s27 = sadd.s32 %s20, 1
      %s28 = ssub.s32 %s20, %s27
      %p29 = scmp.eq.s32.totalorder %s28, 0
      %s31 = sadd.s32 %s30, 1
      %s32 = scalar_select %p29, %s30, %s31
      %p35 = pneg %p29
      %p36 = scmp.eq.s32.totalorder %s20, 1
      %p37 = por %p35, %p36
      %p38 = scmp.ne.s32.totalorder %s30, %s33
      %p39 = scmp.eq.s32.totalorder %s20, 0
      %p40 = por %p38, %p39
      %p41 = scmp.ne.s32.totalorder %s30, %s33
      %p42 = scmp.eq.s32.totalorder %s25, 1
      %p43 = por %p41, %p42
      %p44 = scmp.ne.s32.totalorder %s33, %s34
      %p45 = scmp.eq.s32.totalorder %s25, 0
      %p46 = por %p44, %p45
      %p47 = scmp.ne.s32.totalorder %s33, %s34
      %p48 = scmp.eq.s32.totalorder %s26, 1
      %p49 = por %p47, %p48
      %p51 = scmp.ne.s32.totalorder %s34, %s50
      %p52 = scmp.eq.s32.totalorder %s26, 0
      %p53 = por %p51, %p52
      %s55 = sadd.s32 %s54, 1
      %p58 = scmp.eq.s32.totalorder %s20, 1
      %p59 = scmp.ne.s32.totalorder %s54, %s56
      %p60 = scmp.eq.s32.totalorder %s20, 0
      %p61 = por %p59, %p60
      %p62 = scmp.ne.s32.totalorder %s54, %s56
      %p63 = scmp.eq.s32.totalorder %s25, 1
      %p64 = por %p62, %p63
      %p65 = scmp.ne.s32.totalorder %s56, %s57
      %p66 = scmp.eq.s32.totalorder %s25, 0
      %p67 = por %p65, %p66
      %p68 = scmp.ne.s32.totalorder %s56, %s57
      %p69 = scmp.eq.s32.totalorder %s26, 1
      %p70 = por %p68, %p69
      %p72 = scmp.ne.s32.totalorder %s57, %s71
      %p73 = scmp.eq.s32.totalorder %s26, 0
      %p74 = por %p72, %p73
      %s76 = sadd.s32 %s75, 1
      %p79 = scmp.eq.s32.totalorder %s20, 1
      %p80 = scmp.ne.s32.totalorder %s75, %s77
      %p81 = scmp.eq.s32.totalorder %s20, 0
      %p82 = por %p80, %p81
      %p83 = scmp.ne.s32.totalorder %s75, %s77
      %p84 = scmp.eq.s32.totalorder %s25, 1
      %p85 = por %p83, %p84
      %p86 = scmp.ne.s32.totalorder %s77, %s78
      %p87 = scmp.eq.s32.totalorder %s25, 0
      %p88 = por %p86, %p87
      %p89 = scmp.ne.s32.totalorder %s77, %s78
      %p90 = scmp.eq.s32.totalorder %s26, 1
      %p91 = por %p89, %p90
      %p93 = scmp.ne.s32.totalorder %s78, %s92
      %p94 = scmp.eq.s32.totalorder %s26, 0
      %p95 = por %p93, %p94
      %s97 = sadd.s32 %s96, 1
      %p100 = scmp.eq.s32.totalorder %s20, 1
      %p101 = scmp.ne.s32.totalorder %s96, %s98
      %p102 = scmp.eq.s32.totalorder %s20, 0
      %p103 = por %p101, %p102
      %p104 = scmp.ne.s32.totalorder %s96, %s98
      %p105 = scmp.eq.s32.totalorder %s25, 1
      %p106 = por %p104, %p105
      %p107 = scmp.ne.s32.totalorder %s98, %s99
      %p108 = scmp.eq.s32.totalorder %s25, 0
      %p109 = por %p107, %p108
      %p110 = scmp.ne.s32.totalorder %s98, %s99
      %p111 = scmp.eq.s32.totalorder %s26, 1
      %p112 = por %p110, %p111
      %p114 = scmp.ne.s32.totalorder %s99, %s113
      %p115 = scmp.eq.s32.totalorder %s26, 0
      %p116 = por %p114, %p115
      %s118 = sadd.s32 %s117, 1
      %p121 = scmp.eq.s32.totalorder %s20, 1
      %p122 = scmp.ne.s32.totalorder %s117, %s119
      %p123 = scmp.eq.s32.totalorder %s20, 0
      %p124 = por %p122, %p123
      %p125 = scmp.ne.s32.totalorder %s117, %s119
      %p126 = scmp.eq.s32.totalorder %s25, 1
      %p127 = por %p125, %p126
      %p128 = scmp.ne.s32.totalorder %s119, %s120
      %p129 = scmp.eq.s32.totalorder %s25, 0
      %p130 = por %p128, %p129
      %p131 = scmp.ne.s32.totalorder %s119, %s120
      %p132 = scmp.eq.s32.totalorder %s26, 1
      %p133 = por %p131, %p132
      %p135 = scmp.ne.s32.totalorder %s120, %s134
      %p136 = scmp.eq.s32.totalorder %s26, 0
      %p137 = por %p135, %p136
      %s139 = sadd.s32 %s138, 1
      %p142 = scmp.eq.s32.totalorder %s20, 1
      %p143 = scmp.ne.s32.totalorder %s138, %s140
      %p144 = scmp.eq.s32.totalorder %s20, 0
      %p145 = por %p143, %p144
      %p146 = scmp.ne.s32.totalorder %s138, %s140
      %p147 = scmp.eq.s32.totalorder %s25, 1
      %p148 = por %p146, %p147
      %p149 = scmp.ne.s32.totalorder %s140, %s141
      %p150 = scmp.eq.s32.totalorder %s25, 0
      %p151 = por %p149, %p150
      %p152 = scmp.ne.s32.totalorder %s140, %s141
      %p153 = scmp.eq.s32.totalorder %s26, 1
      %p154 = por %p152, %p153
      %p156 = scmp.ne.s32.totalorder %s141, %s155
      %p157 = scmp.eq.s32.totalorder %s26, 0
      %p158 = por %p156, %p157
      %s160 = sadd.s32 %s159, 1
      %p163 = scmp.eq.s32.totalorder %s20, 1
      %p164 = scmp.ne.s32.totalorder %s159, %s161
      %p165 = scmp.eq.s32.totalorder %s20, 0
      %p166 = por %p164, %p165
      %p167 = scmp.ne.s32.totalorder %s159, %s161
      %p168 = scmp.eq.s32.totalorder %s25, 1
      %p169 = por %p167, %p168
      %p170 = scmp.ne.s32.totalorder %s161, %s162
      %p171 = scmp.eq.s32.totalorder %s25, 0
      %p172 = por %p170, %p171
      %p173 = scmp.ne.s32.totalorder %s161, %s162
      %p174 = scmp.eq.s32.totalorder %s26, 1
      %p175 = por %p173, %p174
      %p177 = scmp.ne.s32.totalorder %s162, %s176
      %p178 = scmp.eq.s32.totalorder %s26, 0
      %p179 = por %p177, %p178
      %s180 = ssub.s32 %s20, %s27
      %p181 = scmp.eq.s32.totalorder %s180, 0
      %s183 = sadd.s32 %s182, 1
      %s184 = scalar_select %p181, %s182, %s183
      %p187 = pneg %p181
      %p188 = scmp.eq.s32.totalorder %s20, 1
      %p189 = por %p187, %p188
      %p190 = scmp.ne.s32.totalorder %s182, %s185
      %p191 = scmp.eq.s32.totalorder %s20, 0
      %p192 = por %p190, %p191
      %p193 = scmp.ne.s32.totalorder %s182, %s185
      %p194 = scmp.eq.s32.totalorder %s25, 1
      %p195 = por %p193, %p194
      %p196 = scmp.ne.s32.totalorder %s185, %s186
      %p197 = scmp.eq.s32.totalorder %s25, 0
      %p198 = por %p196, %p197
      %p199 = scmp.ne.s32.totalorder %s185, %s186
      %p200 = scmp.eq.s32.totalorder %s26, 1
      %p201 = por %p199, %p200
      %p203 = scmp.ne.s32.totalorder %s186, %s202
      %p204 = scmp.eq.s32.totalorder %s26, 0
      %p205 = por %p203, %p204
      %p206 = scmp.le.s32.totalorder 1, %s20
      %p207 = scmp.lt.s32.totalorder %s20, 3
      %p208 = pnand %p206, %p207
      %p209 = pneg %p208
      // Predicated region
      $region9: #{tpu_custom_call.1} parent=5 // pred_check
        _
      $region10: #{tpu_custom_call.1} parent=5 // pred_check_branch
        %211 = sbr.rel (%p208) target = $region12
      $region11: #{tpu_custom_call.1} parent=5 // pred_region
        %s212 = ssub.s32 %s20, 1
        // Predicated region
        $region13: #{tpu_custom_call.1} parent=11 // pred_check
          %p213 = pneg %p67
        $region14: #{tpu_custom_call.1} parent=11 // pred_check_branch
          %215 = sbr.rel (%p213) target = $region16
        $region15: #{tpu_custom_call.1} parent=11 // pred_region
          %s217 = ssub.s32 1024, 1024
          %218 = vsyncadd [#allocation6], %s217
          %s219 = sshll.u32 [#allocation5], 4
          %s220 = int_to_ptr.vmem [resolvable:$true] %s219
          %225 = dma.hbm_to_vmem [thread:$0]  %s1, 1024, %s220, [#allocation6], 64, 64, 4
        $region16: #{tpu_custom_call.1} parent=11 // pred_fallthru
          _
        // Predicated region
        $region17: #{tpu_custom_call.1} parent=11 // pred_check
          %p226 = pneg %p88
        $region18: #{tpu_custom_call.1} parent=11 // pred_check_branch
          %228 = sbr.rel (%p226) target = $region20
        $region19: #{tpu_custom_call.1} parent=11 // pred_region
          _
        $region20: #{tpu_custom_call.1} parent=11 // pred_fallthru
          _
        // Predicated region
        $region21: #{tpu_custom_call.1} parent=11 // pred_check
          %p229 = pneg %p109
        $region22: #{tpu_custom_call.1} parent=11 // pred_check_branch
          %231 = sbr.rel (%p229) target = $region24
        $region23: #{tpu_custom_call.1} parent=11 // pred_region
          %s233 = ssub.s32 1024, 1024
          %234 = vsyncadd [#allocation6], %s233
          %s235 = sshll.u32 [#allocation7], 4
          %s236 = int_to_ptr.vmem [resolvable:$true] %s235
          %241 = dma.hbm_to_vmem [thread:$0]  %s3, 1024, %s236, [#allocation6], 64, 64, 4
        $region24: #{tpu_custom_call.1} parent=11 // pred_fallthru
          _
        // Predicated region
        $region25: #{tpu_custom_call.1} parent=11 // pred_check
          %p242 = pneg %p130
        $region26: #{tpu_custom_call.1} parent=11 // pred_check_branch
          %244 = sbr.rel (%p242) target = $region28
        $region27: #{tpu_custom_call.1} parent=11 // pred_region
          _
        $region28: #{tpu_custom_call.1} parent=11 // pred_fallthru
          _
        // Predicated region
        $region29: #{tpu_custom_call.1} parent=11 // pred_check
          %p245 = pneg %p151
        $region30: #{tpu_custom_call.1} parent=11 // pred_check_branch
          %247 = sbr.rel (%p245) target = $region32
        $region31: #{tpu_custom_call.1} parent=11 // pred_region
          _
        $region32: #{tpu_custom_call.1} parent=11 // pred_fallthru
          _
        // Predicated region
        $region33: #{tpu_custom_call.1} parent=11 // pred_check
          %p248 = pneg %p172
        $region34: #{tpu_custom_call.1} parent=11 // pred_check_branch
          %250 = sbr.rel (%p248) target = $region36
        $region35: #{tpu_custom_call.1} parent=11 // pred_region
          _
        $region36: #{tpu_custom_call.1} parent=11 // pred_fallthru
          _
      $region12: #{tpu_custom_call.1} parent=5 // pred_fallthru
        _
      %p251 = scmp.lt.s32.totalorder %s20, 2
      // Predicated region
      $region37: #{tpu_custom_call.1} parent=5 // pred_check
        %p252 = pneg %p251
      $region38: #{tpu_custom_call.1} parent=5 // pred_check_branch
        %254 = sbr.rel (%p252) target = $region40
      $region39: #{tpu_custom_call.1} parent=5 // pred_region
        // Predicated region
        $region41: #{tpu_custom_call.1} parent=39 // pred_check
          %p255 = pneg %p40
        $region42: #{tpu_custom_call.1} parent=39 // pred_check_branch
          %257 = sbr.rel (%p255) target = $region44
        $region43: #{tpu_custom_call.1} parent=39 // pred_region
          %s258 = sand.u32 %s30, 1
          %s259 = scalar_lea.sflag [#allocation3], %s258
          %s260 = sand.u32 %s30, 1
          %s261 = smul.addr %s260, 8
          %s262 = scalar_lea.vmem [#allocation2], %s261
          %s264 = ssub.s32 128, 128
          %265 = vsyncadd %s259, %s264
          %s266 = smul.addr %s20, 128
          %s267 = scalar_lea.hbm %s0, %s266
          %s269 = sshll.u32 %s262, 4
          %s270 = int_to_ptr.vmem [resolvable:$true] %s269
          %272 = dma.hbm_to_vmem [thread:$0]  %s267, 128, %s270, %s259
        $region44: #{tpu_custom_call.1} parent=39 // pred_fallthru
          _
      $region40: #{tpu_custom_call.1} parent=5 // pred_fallthru
        _
      %p273 = scmp.le.s32.totalorder 1, %s20
      %p274 = scmp.lt.s32.totalorder %s20, 3
      %p275 = pnand %p273, %p274
      %p276 = pneg %p275
      // Predicated region
      $region45: #{tpu_custom_call.1} parent=5 // pred_check
        _
      $region46: #{tpu_custom_call.1} parent=5 // pred_check_branch
        %278 = sbr.rel (%p275) target = $region48
      $region47: #{tpu_custom_call.1} parent=5 // pred_region
        %s279 = ssub.s32 %s20, 1
        %s280 = sand.u32 %s33, 1
        %s281 = scalar_lea.sflag [#allocation3], %s280
        %s282 = sand.u32 %s33, 1
        %s283 = smul.addr %s282, 8
        %s284 = scalar_lea.vmem [#allocation2], %s283
        // Predicated region
        $region49: #{tpu_custom_call.1} parent=47 // pred_check
          %p285 = pneg %p46
        $region50: #{tpu_custom_call.1} parent=47 // pred_check_branch
          %287 = sbr.rel (%p285) target = $region52
        $region51: #{tpu_custom_call.1} parent=47 // pred_region
          %288 = dma.done %s281, 128
        $region52: #{tpu_custom_call.1} parent=47 // pred_fallthru
          _
        // Predicated region
        $region53: #{tpu_custom_call.1} parent=47 // pred_check
          %p289 = pneg %p67
        $region54: #{tpu_custom_call.1} parent=47 // pred_check_branch
          %291 = sbr.rel (%p289) target = $region56
        $region55: #{tpu_custom_call.1} parent=47 // pred_region
          %292 = dma.done [#allocation6], 1024
        $region56: #{tpu_custom_call.1} parent=47 // pred_fallthru
          _
        // Predicated region
        $region57: #{tpu_custom_call.1} parent=47 // pred_check
          %p293 = pneg %p109
        $region58: #{tpu_custom_call.1} parent=47 // pred_check_branch
          %295 = sbr.rel (%p293) target = $region60
        $region59: #{tpu_custom_call.1} parent=47 // pred_region
          %296 = dma.done [#allocation6], 1024
        $region60: #{tpu_custom_call.1} parent=47 // pred_fallthru
          _
        %s297 = sand.u32 %s33, 1
        %s298 = scalar_lea.sflag [#allocation3], %s297
        %s299 = sand.u32 %s33, 1
        %s300 = smul.addr %s299, 8
        %s301 = scalar_lea.vmem [#allocation2], %s300
        %p302 = pneg %p46
        %p303 = pneg %p43
        %p304 = pneg %p67
        %p305 = pneg %p64
        %p306 = pneg %p88
        %p307 = pneg %p85
        %p308 = pneg %p109
        %p309 = pneg %p106
        %p310 = pneg %p130
        %p311 = pneg %p127
        %p312 = pneg %p151
        %p313 = pneg %p148
        %p314 = pneg %p172
        %p315 = pneg %p169
        %p316 = pneg %p198
        %p317 = pneg %p195
        %s318 = sand.u32 %s185, 1
        %s319 = scalar_lea.sflag [#allocation4], %s318
        %s320 = sand.u32 %s185, 1
        %s321 = smul.addr %s320, 8
        %s322 = scalar_lea.vmem [#allocation8], %s321
        %v324 = vld [vmem:[%s284] sm:$0xff]
        %v325 = vpack.c.bf16 %v324, %v324
        %v326 = vld [vmem:[#allocation5] sm:$0xf]
        %v327 = vld [vmem:[#allocation5 + $0x4] sm:$0xf]
        %v328 = vld [vmem:[#allocation5 + $0x8] sm:$0xf]
        %v329 = vld [vmem:[#allocation5 + $0xc] sm:$0xf]
        %v330 = vld [vmem:[#allocation5 + $0x10] sm:$0xf]
        %v331 = vld [vmem:[#allocation5 + $0x14] sm:$0xf]
        %v332 = vld [vmem:[#allocation5 + $0x18] sm:$0xf]
        %v333 = vld [vmem:[#allocation5 + $0x1c] sm:$0xf]
        %v334 = vld [vmem:[#allocation5 + $0x20] sm:$0xf]
        %v335 = vld [vmem:[#allocation5 + $0x24] sm:$0xf]
        %v336 = vld [vmem:[#allocation5 + $0x28] sm:$0xf]
        %v337 = vld [vmem:[#allocation5 + $0x2c] sm:$0xf]
        %v338 = vld [vmem:[#allocation5 + $0x30] sm:$0xf]
        %v339 = vld [vmem:[#allocation5 + $0x34] sm:$0xf]
        %v340 = vld [vmem:[#allocation5 + $0x38] sm:$0xf]
        %v341 = vld [vmem:[#allocation5 + $0x3c] sm:$0xf]
        %v342 = vld [vmem:[%s2] sm:$0x1]
        %v343 = vld [vmem:[#allocation7] sm:$0xf]
        %v344 = vld [vmem:[#allocation7 + $0x4] sm:$0xf]
        %v345 = vld [vmem:[#allocation7 + $0x8] sm:$0xf]
        %v346 = vld [vmem:[#allocation7 + $0xc] sm:$0xf]
        %v347 = vld [vmem:[#allocation7 + $0x10] sm:$0xf]
        %v348 = vld [vmem:[#allocation7 + $0x14] sm:$0xf]
        %v349 = vld [vmem:[#allocation7 + $0x18] sm:$0xf]
        %v350 = vld [vmem:[#allocation7 + $0x1c] sm:$0xf]
        %v351 = vld [vmem:[#allocation7 + $0x20] sm:$0xf]
        %v352 = vld [vmem:[#allocation7 + $0x24] sm:$0xf]
        %v353 = vld [vmem:[#allocation7 + $0x28] sm:$0xf]
        %v354 = vld [vmem:[#allocation7 + $0x2c] sm:$0xf]
        %v355 = vld [vmem:[#allocation7 + $0x30] sm:$0xf]
        %v356 = vld [vmem:[#allocation7 + $0x34] sm:$0xf]
        %v357 = vld [vmem:[#allocation7 + $0x38] sm:$0xf]
        %v358 = vld [vmem:[#allocation7 + $0x3c] sm:$0xf]
        %v360 = vlaneseq
        %v361 = vshrl.u32 %v360, 7
        %v362 = vsub.s32 0, %v361
        %v363 = vrot.slane %v342, %v362
        %v381 = vunpack.c.l.b16 %v326
        %v382 = vunpack.c.l.b16 %v327
        %v383 = vunpack.c.l.b16 %v328
        %v384 = vunpack.c.l.b16 %v329
        %v385 = vunpack.c.l.b16 %v330
        %v386 = vunpack.c.l.b16 %v331
        %v387 = vunpack.c.l.b16 %v332
        %v388 = vunpack.c.l.b16 %v333
        %v389 = vunpack.c.l.b16 %v334
        %v390 = vunpack.c.l.b16 %v335
        %v391 = vunpack.c.l.b16 %v336
        %v392 = vunpack.c.l.b16 %v337
        %v393 = vunpack.c.l.b16 %v338
        %v394 = vunpack.c.l.b16 %v339
        %v395 = vunpack.c.l.b16 %v340
        %v396 = vunpack.c.l.b16 %v341
        %v397 = vpack.c.b16 %v382, %v381
        %v398 = vpack.c.b16 %v384, %v383
        %v399 = vpack.c.b16 %v386, %v385
        %v400 = vpack.c.b16 %v388, %v387
        %v401 = vpack.c.b16 %v390, %v389
        %v402 = vpack.c.b16 %v392, %v391
        %v403 = vpack.c.b16 %v394, %v393
        %v404 = vpack.c.b16 %v396, %v395
        %413 = vmatprep.subr.bf16.mxu0 0
        %414 = vmatpush1.bf16.msra.mxu0 %v404
        %415 = vmatprep.subr.bf16.mxu0 0
        %416 = vmatpush1.bf16.msra.mxu0 %v403
        %417 = vmatprep.subr.bf16.mxu0 0
        %418 = vmatpush1.bf16.msra.mxu0 %v402
        %419 = vmatprep.subr.bf16.mxu0 0
        %420 = vmatpush1.bf16.msra.mxu0 %v401
        %421 = vmatprep.subr.bf16.mxu0 0
        %422 = vmatpush1.bf16.msra.mxu0 %v400
        %423 = vmatprep.subr.bf16.mxu0 0
        %424 = vmatpush1.bf16.msra.mxu0 %v399
        %425 = vmatprep.subr.bf16.mxu0 0
        %426 = vmatpush1.bf16.msra.mxu0 %v398
        %427 = vmatprep.subr.bf16.mxu0 0
        %428 = vmatpush1.bf16.msra.mxu0 %v397
        %429 = vmatprep.subr.bf16.mxu0 0
        %430 = vmatpush2.bf16.msra.mxu0 0
        %431 = vmatprep.subr.bf16.mxu0 0
        %432 = vmatpush2.bf16.msra.mxu0 0
        %433 = vmatprep.subr.bf16.mxu0 0
        %434 = vmatpush2.bf16.msra.mxu0 0
        %435 = vmatprep.subr.bf16.mxu0 0
        %436 = vmatpush2.bf16.msra.mxu0 0
        %437 = vmatprep.subr.bf16.mxu0 0
        %438 = vmatpush2.bf16.msra.mxu0 0
        %439 = vmatprep.subr.bf16.mxu0 0
        %440 = vmatpush2.bf16.msra.mxu0 0
        %441 = vmatprep.subr.bf16.mxu0 0
        %442 = vmatpush2.bf16.msra.mxu0 0
        %443 = vmatprep.subr.bf16.mxu0 0
        %444 = vmatpush2.bf16.msra.mxu0 0
        %445 = vmatprep.mubr.bf16.mxu0 0
        %446 = vmatmul.mubr.bf16.gmra.mxu0 %v325
        %v447 = vpop.f32.mrf.mxu0
        %v448 = vadd.f32 %v363, %v447
        %v449 = vpop.f32.mrf.mxu0
        %v450 = vpop.f32.mrf.mxu0
        %v451 = vpop.f32.mrf.mxu0
        %452 = vdwg.mxu0
        %v453 = vmax.f32 %v448, 0.0
        %v454 = vpack.c.bf16 %v453, %v453
        %v455 = vld [vmem:[%s4] sm:$0x1]
        %v457 = vlaneseq
        %v458 = vshrl.u32 %v457, 7
        %v459 = vsub.s32 0, %v458
        %v460 = vrot.slane %v455, %v459
        %v478 = vunpack.c.l.b16 %v343
        %v479 = vunpack.c.l.b16 %v344
        %v480 = vunpack.c.l.b16 %v345
        %v481 = vunpack.c.l.b16 %v346
        %v482 = vunpack.c.l.b16 %v347
        %v483 = vunpack.c.l.b16 %v348
        %v484 = vunpack.c.l.b16 %v349
        %v485 = vunpack.c.l.b16 %v350
        %v486 = vunpack.c.l.b16 %v351
        %v487 = vunpack.c.l.b16 %v352
        %v488 = vunpack.c.l.b16 %v353
        %v489 = vunpack.c.l.b16 %v354
        %v490 = vunpack.c.l.b16 %v355
        %v491 = vunpack.c.l.b16 %v356
        %v492 = vunpack.c.l.b16 %v357
        %v493 = vunpack.c.l.b16 %v358
        %v494 = vpack.c.b16 %v479, %v478
        %v495 = vpack.c.b16 %v481, %v480
        %v496 = vpack.c.b16 %v483, %v482
        %v497 = vpack.c.b16 %v485, %v484
        %v498 = vpack.c.b16 %v487, %v486
        %v499 = vpack.c.b16 %v489, %v488
        %v500 = vpack.c.b16 %v491, %v490
        %v501 = vpack.c.b16 %v493, %v492
        %510 = vmatprep.subr.bf16.mxu0 0
        %511 = vmatpush1.bf16.msra.mxu0 %v501
        %512 = vmatprep.subr.bf16.mxu0 0
        %513 = vmatpush1.bf16.msra.mxu0 %v500
        %514 = vmatprep.subr.bf16.mxu0 0
        %515 = vmatpush1.bf16.msra.mxu0 %v499
        %516 = vmatprep.subr.bf16.mxu0 0
        %517 = vmatpush1.bf16.msra.mxu0 %v498
        %518 = vmatprep.subr.bf16.mxu0 0
        %519 = vmatpush1.bf16.msra.mxu0 %v497
        %520 = vmatprep.subr.bf16.mxu0 0
        %521 = vmatpush1.bf16.msra.mxu0 %v496
        %522 = vmatprep.subr.bf16.mxu0 0
        %523 = vmatpush1.bf16.msra.mxu0 %v495
        %524 = vmatprep.subr.bf16.mxu0 0
        %525 = vmatpush1.bf16.msra.mxu0 %v494
        %526 = vmatprep.subr.bf16.mxu0 0
        %527 = vmatpush2.bf16.msra.mxu0 0
        %528 = vmatprep.subr.bf16.mxu0 0
        %529 = vmatpush2.bf16.msra.mxu0 0
        %530 = vmatprep.subr.bf16.mxu0 0
        %531 = vmatpush2.bf16.msra.mxu0 0
        %532 = vmatprep.subr.bf16.mxu0 0
        %533 = vmatpush2.bf16.msra.mxu0 0
        %534 = vmatprep.subr.bf16.mxu0 0
        %535 = vmatpush2.bf16.msra.mxu0 0
        %536 = vmatprep.subr.bf16.mxu0 0
        %537 = vmatpush2.bf16.msra.mxu0 0
        %538 = vmatprep.subr.bf16.mxu0 0
        %539 = vmatpush2.bf16.msra.mxu0 0
        %540 = vmatprep.subr.bf16.mxu0 0
        %541 = vmatpush2.bf16.msra.mxu0 0
        %542 = vmatprep.mubr.bf16.mxu0 0
        %543 = vmatmul.mubr.bf16.gmra.mxu0 %v454
        %v544 = vpop.f32.mrf.mxu0
        %v545 = vadd.f32 %v460, %v544
        %v546 = vpop.f32.mrf.mxu0
        %v547 = vpop.f32.mrf.mxu0
        %v548 = vpop.f32.mrf.mxu0
        %549 = vdwg.mxu0
        %v550 = vadd.f32 %v545, %v324
        %551 = vadd.xlane.f32.xlu0 %v550
        %v552 = vpop.xlane.xlu0 %551
        %v553 = vmul.f32 %v550, %v550
        %554 = vadd.xlane.f32.xlu0 %v553
        %v555 = vpop.xlane.xlu0 %554
        %v556 = vmul.f32 %v552, 0.03125
        %v557 = vmul.f32 %v555, 0.03125
        %v558 = vmul.f32 %v556, %v556
        %v559 = vsub.f32 %v557, %v558
        %v560 = vsub.f32 %v550, %v556
        %v561 = vadd.f32 %v559, 1e-05
        %v562 = vrsqrt.pop %v561
        %v563 = vmul.f32 %v560, %v562
        %v564 = vld [vmem:[%s5] sm:$0x1]
        %v566 = vlaneseq
        %v567 = vshrl.u32 %v566, 7
        %v568 = vsub.s32 0, %v567
        %v569 = vrot.slane %v564, %v568
        %v571 = vmul.f32 %v563, %v569
        %v572 = vld [vmem:[%s6] sm:$0x1]
        %v574 = vlaneseq
        %v575 = vshrl.u32 %v574, 7
        %v576 = vsub.s32 0, %v575
        %v577 = vrot.slane %v572, %v576
        %v579 = vadd.f32 %v571, %v577
        %580 = vst [vmem:[%s322] sm:$0xff] %v579
        %s581 = sand.u32 %s185, 1
        %s582 = scalar_lea.sflag [#allocation4], %s581
        %s583 = sand.u32 %s185, 1
        %s584 = smul.addr %s583, 8
        %s585 = scalar_lea.vmem [#allocation8], %s584
        // Predicated region
        $region61: #{tpu_custom_call.1} parent=47 // pred_check
          %p586 = pneg %p195
        $region62: #{tpu_custom_call.1} parent=47 // pred_check_branch
          %588 = sbr.rel (%p586) target = $region64
        $region63: #{tpu_custom_call.1} parent=47 // pred_region
          %s590 = ssub.s32 128, 128
          %591 = vsyncadd %s582, %s590
          %s592 = smul.addr %s25, 128
          %s593 = scalar_lea.hbm %s7, %s592
          %s595 = sshll.u32 %s585, 4
          %s596 = int_to_ptr.vmem [resolvable:$true] %s595
          %598 = dma.vmem_to_hbm [thread:$0]  %s596, 128, %s593, %s582
        $region64: #{tpu_custom_call.1} parent=47 // pred_fallthru
          _
      $region48: #{tpu_custom_call.1} parent=5 // pred_fallthru
        _
      %p599 = scmp.le.s32.totalorder 2, %s20
      // Predicated region
      $region65: #{tpu_custom_call.1} parent=5 // pred_check
        %p600 = pneg %p599
      $region66: #{tpu_custom_call.1} parent=5 // pred_check_branch
        %602 = sbr.rel (%p600) target = $region68
      $region67: #{tpu_custom_call.1} parent=5 // pred_region
        %s603 = ssub.s32 %s20, 2
        // Predicated region
        $region69: #{tpu_custom_call.1} parent=67 // pred_check
          %p604 = pneg %p201
        $region70: #{tpu_custom_call.1} parent=67 // pred_check_branch
          %606 = sbr.rel (%p604) target = $region72
        $region71: #{tpu_custom_call.1} parent=67 // pred_region
          %s607 = sand.u32 %s186, 1
          %s608 = scalar_lea.sflag [#allocation4], %s607
          %s609 = sand.u32 %s186, 1
          %s610 = smul.addr %s609, 8
          %s611 = scalar_lea.vmem [#allocation8], %s610
          %612 = dma.done %s608, 128
        $region72: #{tpu_custom_call.1} parent=67 // pred_fallthru
          _
      $region68: #{tpu_custom_call.1} parent=5 // pred_fallthru
        _
    $region6: #{tpu_custom_call.1} parent=1 // loop_footer
      %s24 = sadd.s32 1, %s20
    $region7: #{tpu_custom_call.1} parent=1 // loop_footer_branch
      %19 = sbr.rel target = $region3
    $region8: #{tpu_custom_call.1} parent=1 // loop_exit
      _
    %613 = vsyncpa [#allocation3], 1
    %s614 = scalar_lea.sflag [#allocation3], 1
    %615 = vsyncpa %s614, 1
    %616 = vsyncpa [#allocation6], 1
    %617 = vsyncpa [#allocation4], 1
    %s618 = scalar_lea.sflag [#allocation4], 1
    %619 = vsyncpa %s618, 1

</llo_original>
